<compile_context>
chip_gen: v5e
topology: v5e:2x2
jax: 0.10.0
libtpu: 0.0.40
codegen_flags: <defaults>
</compile_context>

<pallas_src>
import jax
import jax.numpy as jnp
from jax.experimental import pallas as pl
from jax.experimental.pallas import tpu as pltpu

D_MODEL = 32
WINDOW = 64
STRIDE = WINDOW // 2
BN_EPS = 1e-5


def _noise_detector_kernel(chunks_ref, w1_ref, pp_ref, interp_ref, rep_ref,
                           sel_ref, out_ref):
    nc, s = chunks_ref.shape            # nc = B*(L_out+1) contiguous STRIDE-chunks
    nw = nc - 1                         # candidate windows (adjacent chunk pairs)
    b = sel_ref.shape[0]
    l_out = rep_ref.shape[1]
    m = b * l_out                       # number of VALID windows (conv output positions)

    # --- Conv1d(1, D, kernel=WINDOW, stride=WINDOW//2): window i = [chunk i | chunk i+1],
    # so the conv is two half-window MXU matmuls summed (im2col never touches HBM).
    left = chunks_ref[0:nw, :]                                        # (nw, STRIDE)
    right = chunks_ref[1:nc, :]                                       # (nw, STRIDE)
    feat = (jnp.dot(left, w1_ref[0:s, :], preferred_element_type=jnp.float32)
            + jnp.dot(right, w1_ref[s:2 * s, :],
                      preferred_element_type=jnp.float32))            # (nw, D)
    # Conv bias b1 is omitted on purpose: it cancels exactly under training-mode BN.

    # --- BatchNorm1d (training mode), one pass, affine folded in.  `valid` masks
    # the nw - m candidate windows that straddle a batch boundary (their rep rows
    # are all-zero), so the batch statistics stay exactly those of the M real rows.
    valid = jnp.sum(rep_ref[...], axis=-1, keepdims=True)             # (nw, 1) in {0,1}
    inv_m = 1.0 / float(m)
    fv = feat * valid
    mean = jnp.sum(fv, axis=0, keepdims=True) * inv_m                 # (1, D)
    var = jnp.maximum(jnp.sum(fv * feat, axis=0, keepdims=True) * inv_m
                      - mean * mean, 0.0)                             # (1, D)

    gamma = pp_ref[0:1, :]
    beta = pp_ref[1:2, :]
    w2_row = pp_ref[2:3, :]
    b2 = pp_ref[3:4, 0:1]

    a = gamma * jax.lax.rsqrt(var + BN_EPS)
    bias = beta - mean * a
    act = jnp.maximum(feat * a + bias, 0.0)                           # ReLU, (nw, D)

    # --- Conv1d(D, 1, kernel=1): VPU multiply + lane reduce (keep MXU out of N=1).
    logit = jnp.sum(act * w2_row, axis=-1, keepdims=True) + b2        # (nw, 1)

    # --- Sigmoid as a single EUP transcendental, exact in f32.
    mask_small = 0.5 * jnp.tanh(0.5 * logit) + 0.5                    # (nw, 1)

    # --- Un-flatten (nw, 1) -> (B, L_out) with a tiny matmul against shape-only
    # 0/1 constants (avoids an in-kernel sublane->lane reshape):
    #   mask2d[b, j] = sum_m sel[b, m] * mask_small[m] * rep[m, j]
    mask2d = jnp.dot(sel_ref[...], mask_small * rep_ref[...],
                     preferred_element_type=jnp.float32)              # (B, L_out)

    # --- F.interpolate(mode='linear', align_corners=False) as one matmul with the
    # shared (L_out, L_tile) interp matrix -> lane-dense (B, L_tile) output tile.
    out_ref[...] = jnp.dot(mask2d, interp_ref[...],
                           preferred_element_type=jnp.float32)        # (B, L_tile)


def _interp_matrix(l_out, l):
    """(L_out, L) matrix implementing F.interpolate(mode='linear', align_corners=False)."""
    scale = l_out / l
    src = jnp.maximum(scale * (jnp.arange(l, dtype=jnp.float32) + 0.5) - 0.5, 0.0)
    i0 = jnp.floor(src).astype(jnp.int32)
    lam = src - i0.astype(jnp.float32)
    i1 = jnp.minimum(i0 + 1, l_out - 1)
    return (jax.nn.one_hot(i0, l_out, dtype=jnp.float32).T * (1.0 - lam)
            + jax.nn.one_hot(i1, l_out, dtype=jnp.float32).T * lam)


def init_params(key):
    k1, k2, k3, k4, k5, k6 = jax.random.split(key, 6)
    # Conv1d(1, d_model, WINDOW): weight (d_model, 1, WINDOW) stored transposed (WINDOW, d_model)
    w1 = jax.random.normal(k1, (WINDOW, D_MODEL), jnp.float32) / jnp.sqrt(WINDOW)
    b1 = 0.01 * jax.random.normal(k2, (1, D_MODEL), jnp.float32)  # folded away by BN in-kernel
    # BatchNorm1d(d_model) affine params
    gamma = 1.0 + 0.1 * jax.random.normal(k3, (1, D_MODEL), jnp.float32)
    beta = 0.1 * jax.random.normal(k4, (1, D_MODEL), jnp.float32)
    # Conv1d(d_model, 1, 1): weight (1, d_model, 1) stored as (d_model, 1)
    w2 = jax.random.normal(k5, (D_MODEL, 1), jnp.float32) / jnp.sqrt(D_MODEL)
    b2 = 0.01 * jax.random.normal(k6, (1, 1), jnp.float32)
    return dict(w1=w1, b1=b1, gamma=gamma, beta=beta, w2=w2, b2=b2)


@jax.jit
def noise_detector(x, params):
    B, L = x.shape
    L_out = (L - WINDOW) // STRIDE + 1
    n_chunks = L_out + 1                  # STRIDE-chunks actually read by the conv
    NC = B * n_chunks
    NW = NC - 1

    x = x.astype(jnp.float32)
    # Copy-free chunking: the conv only reads the first (L_out+1)*STRIDE samples of
    # each row; reshape them to contiguous STRIDE-chunks.  Windows are assembled
    # IN-KERNEL from adjacent chunk pairs.
    chunks = x[:, :n_chunks * STRIDE].reshape(NC, STRIDE)

    # Shape-only constants (constant-folded by XLA under jit):
    interp = _interp_matrix(L_out, L)                                  # (L_out, L)
    m_ids = jnp.arange(NW)
    # rep[m, j] = 1 iff candidate window m is the j-th window of its batch row
    # (all-zero row for the B-1 candidates straddling a batch boundary).
    rep = (m_ids[:, None] % n_chunks
           == jnp.arange(L_out)[None, :]).astype(jnp.float32)          # (NW, L_out)
    # sel[b, m] = 1 iff candidate window m belongs to batch row b.
    sel = (m_ids[None, :] // n_chunks
           == jnp.arange(B)[:, None]).astype(jnp.float32)              # (B, NW)

    # Pack the tiny per-channel params into one VMEM block: gamma, beta, w2, b2.
    packed = jnp.concatenate([
        params["gamma"],
        params["beta"],
        params["w2"].T,
        jnp.broadcast_to(params["b2"], (1, D_MODEL)),
    ], axis=0)                                                         # (4, D)

    # Lane tile over the output length: one step at small L; at large L it streams
    # the interp matrix / output and gives v7x's two TensorCores independent tiles.
    TL = L if L <= 512 else 512
    grid = (pl.cdiv(L, TL),)

    return pl.pallas_call(
        _noise_detector_kernel,
        out_shape=jax.ShapeDtypeStruct((B, L), jnp.float32),
        grid_spec=pl.GridSpec(
            grid=grid,
            in_specs=[
                pl.BlockSpec((NC, STRIDE), lambda j: (0, 0)),          # chunks
                pl.BlockSpec((WINDOW, D_MODEL), lambda j: (0, 0)),     # w1
                pl.BlockSpec((4, D_MODEL), lambda j: (0, 0)),          # gamma/beta/w2/b2
                pl.BlockSpec((L_out, TL), lambda j: (0, j)),           # interp tile
                pl.BlockSpec((NW, L_out), lambda j: (0, 0)),           # rep
                pl.BlockSpec((B, NW), lambda j: (0, 0)),               # sel
            ],
            out_specs=pl.BlockSpec((B, TL), lambda j: (0, j)),
        ),
        compiler_params=pltpu.CompilerParams(
            # Each output L tile is independent (the tiny feature path is recomputed
            # per tile), so the grid axis is safe to shard across TensorCores.
            dimension_semantics=("parallel",),
            # Working set is a few tens of KiB at these shapes -> default scoped
            # VMEM limit is ample; recompute from block bytes if tiles grow.
        ),
    )(chunks, params["w1"], packed, interp, rep, sel)


def noise_detector_reference(x, params):
    """Pure-JAX reference mirroring the PyTorch forward (training-mode BN, exact sigmoid)."""
    B, L = x.shape
    L_out = (L - WINDOW) // STRIDE + 1
    idx = jnp.arange(L_out)[:, None] * STRIDE + jnp.arange(WINDOW)[None, :]
    patches = x.astype(jnp.float32)[:, idx].reshape(B * L_out, WINDOW)
    feat = patches @ params["w1"] + params["b1"]
    mean = feat.mean(axis=0, keepdims=True)
    var = ((feat - mean) ** 2).mean(axis=0, keepdims=True)
    act = jnp.maximum((feat - mean) / jnp.sqrt(var + BN_EPS) * params["gamma"]
                      + params["beta"], 0.0)
    logit = act @ params["w2"] + params["b2"]
    mask_small = jax.nn.sigmoid(logit).reshape(B, L_out)
    return mask_small @ _interp_matrix(L_out, L)


if __name__ == "__main__":
    key = jax.random.PRNGKey(0)
    k_x, k_p = jax.random.split(key)
    B, L = 2, 288  # L_out = (288 - 64)//32 + 1 = 8, M = 16
    x = jax.random.normal(k_x, (B, L), dtype=jnp.float32)
    params = init_params(k_p)

    mask = jax.block_until_ready(noise_detector(x, params))
    ref = noise_detector_reference(x, params)

    assert mask.shape == (B, L), mask.shape
    max_err = float(jnp.max(jnp.abs(mask - ref)))
    assert max_err <= 1e-3, max_err
    assert bool(jnp.all((mask >= -1e-6) & (mask <= 1.0 + 1e-6)))
    assert bool(jnp.all(jnp.isfinite(mask)))
    print("KERNEL_OK")
</pallas_src>

<mosaic_0001>
module attributes {stable_mosaic.version = 11 : i64} {
  func.func @_noise_detector_kernel(%arg0: i32, %arg1: memref<18x32xf32, #tpu.memory_space<vmem>>, %arg2: memref<64x32xf32, #tpu.memory_space<vmem>>, %arg3: memref<4x32xf32, #tpu.memory_space<vmem>>, %arg4: memref<8x288xf32, #tpu.memory_space<vmem>>, %arg5: memref<17x8xf32, #tpu.memory_space<vmem>>, %arg6: memref<2x17xf32, #tpu.memory_space<vmem>>, %arg7: memref<2x288xf32, #tpu.memory_space<vmem>>) attributes {dimension_semantics = [#tpu.dimension_semantics<parallel>], iteration_bounds = array<i64: 1>, scalar_prefetch = 0 : i64, scratch_operands = 0 : i64, tpu.core_type = #tpu.core_type<tc>, window_params = [{pipeline_mode = #tpu.pipeline_mode<synchronous>, transform_indices = @transform_0, window_bounds = array<i64: 18, 32>}, {pipeline_mode = #tpu.pipeline_mode<synchronous>, transform_indices = @transform_1, window_bounds = array<i64: 64, 32>}, {pipeline_mode = #tpu.pipeline_mode<synchronous>, transform_indices = @transform_2, window_bounds = array<i64: 4, 32>}, {transform_indices = @transform_3, window_bounds = array<i64: 8, 288>}, {pipeline_mode = #tpu.pipeline_mode<synchronous>, transform_indices = @transform_4, window_bounds = array<i64: 17, 8>}, {pipeline_mode = #tpu.pipeline_mode<synchronous>, transform_indices = @transform_5, window_bounds = array<i64: 2, 17>}, {transform_indices = @transform_6, window_bounds = array<i64: 2, 288>}]} {
    %c0 = arith.constant 0 : index
    %c0_0 = arith.constant 0 : index
    %0 = vector.load %arg1[%c0, %c0_0] : memref<18x32xf32, #tpu.memory_space<vmem>>, vector<17x32xf32>
    %c1 = arith.constant 1 : index
    %c0_1 = arith.constant 0 : index
    %1 = vector.load %arg1[%c1, %c0_1] : memref<18x32xf32, #tpu.memory_space<vmem>>, vector<17x32xf32>
    %c0_2 = arith.constant 0 : index
    %c0_3 = arith.constant 0 : index
    %2 = vector.load %arg2[%c0_2, %c0_3] : memref<64x32xf32, #tpu.memory_space<vmem>>, vector<32x32xf32>
    %cst = arith.constant dense<0.000000e+00> : vector<17x32xf32>
    %3 = tpu.matmul %0, %2, %cst {dimension_numbers = #tpu.dot_dimension_numbers<[1], [0], [0], [1], [0, 0, 1, 1], [], []>} : vector<17x32xf32>, vector<32x32xf32>, vector<17x32xf32> -> vector<17x32xf32>
    %c32 = arith.constant 32 : index
    %c0_4 = arith.constant 0 : index
    %4 = vector.load %arg2[%c32, %c0_4] : memref<64x32xf32, #tpu.memory_space<vmem>>, vector<32x32xf32>
    %cst_5 = arith.constant dense<0.000000e+00> : vector<17x32xf32>
    %5 = tpu.matmul %1, %4, %cst_5 {dimension_numbers = #tpu.dot_dimension_numbers<[1], [0], [0], [1], [0, 0, 1, 1], [], []>} : vector<17x32xf32>, vector<32x32xf32>, vector<17x32xf32> -> vector<17x32xf32>
    %6 = arith.addf %3, %5 : vector<17x32xf32>
    %c0_6 = arith.constant 0 : index
    %c0_7 = arith.constant 0 : index
    %7 = vector.load %arg5[%c0_6, %c0_7] : memref<17x8xf32, #tpu.memory_space<vmem>>, vector<17x8xf32>
    %cst_8 = arith.constant dense<0.000000e+00> : vector<17xf32>
    %8 = vector.multi_reduction <add>, %7, %cst_8 [1] : vector<17x8xf32> to vector<17xf32>
    %9 = vector.shape_cast %8 : vector<17xf32> to vector<17x1xf32>
    %10 = vector.broadcast %9 : vector<17x1xf32> to vector<17x32xf32>
    %11 = arith.mulf %6, %10 : vector<17x32xf32>
    %cst_9 = arith.constant dense<0.000000e+00> : vector<32xf32>
    %12 = vector.multi_reduction <add>, %11, %cst_9 [0] : vector<17x32xf32> to vector<32xf32>
    %13 = vector.shape_cast %12 : vector<32xf32> to vector<1x32xf32>
    %cst_10 = arith.constant 6.250000e-02 : f32
    %14 = vector.broadcast %cst_10 : f32 to vector<1x32xf32>
    %15 = arith.mulf %13, %14 : vector<1x32xf32>
    %16 = arith.mulf %11, %6 : vector<17x32xf32>
    %cst_11 = arith.constant dense<0.000000e+00> : vector<32xf32>
    %17 = vector.multi_reduction <add>, %16, %cst_11 [0] : vector<17x32xf32> to vector<32xf32>
    %18 = vector.shape_cast %17 : vector<32xf32> to vector<1x32xf32>
    %cst_12 = arith.constant 6.250000e-02 : f32
    %19 = vector.broadcast %cst_12 : f32 to vector<1x32xf32>
    %20 = arith.mulf %18, %19 : vector<1x32xf32>
    %21 = arith.mulf %15, %15 : vector<1x32xf32>
    %22 = arith.subf %20, %21 : vector<1x32xf32>
    %cst_13 = arith.constant 0.000000e+00 : f32
    %23 = vector.broadcast %cst_13 : f32 to vector<1x32xf32>
    %24 = arith.maximumf %22, %23 : vector<1x32xf32>
    %c0_14 = arith.constant 0 : index
    %c0_15 = arith.constant 0 : index
    %25 = vector.load %arg3[%c0_14, %c0_15] : memref<4x32xf32, #tpu.memory_space<vmem>>, vector<1x32xf32>
    %c1_16 = arith.constant 1 : index
    %c0_17 = arith.constant 0 : index
    %26 = vector.load %arg3[%c1_16, %c0_17] : memref<4x32xf32, #tpu.memory_space<vmem>>, vector<1x32xf32>
    %c2 = arith.constant 2 : index
    %c0_18 = arith.constant 0 : index
    %27 = vector.load %arg3[%c2, %c0_18] : memref<4x32xf32, #tpu.memory_space<vmem>>, vector<1x32xf32>
    %c3 = arith.constant 3 : index
    %c0_19 = arith.constant 0 : index
    %28 = vector.load %arg3[%c3, %c0_19] : memref<4x32xf32, #tpu.memory_space<vmem>>, vector<1x1xf32>
    %cst_20 = arith.constant 9.99999974E-6 : f32
    %29 = vector.broadcast %cst_20 : f32 to vector<1x32xf32>
    %30 = arith.addf %24, %29 : vector<1x32xf32>
    %31 = math.rsqrt %30 : vector<1x32xf32>
    %32 = arith.mulf %25, %31 : vector<1x32xf32>
    %33 = arith.mulf %15, %32 : vector<1x32xf32>
    %34 = arith.subf %26, %33 : vector<1x32xf32>
    %35 = vector.broadcast %32 : vector<1x32xf32> to vector<17x32xf32>
    %36 = arith.mulf %6, %35 : vector<17x32xf32>
    %37 = vector.broadcast %34 : vector<1x32xf32> to vector<17x32xf32>
    %38 = arith.addf %36, %37 : vector<17x32xf32>
    %cst_21 = arith.constant 0.000000e+00 : f32
    %39 = vector.broadcast %cst_21 : f32 to vector<17x32xf32>
    %40 = arith.maximumf %38, %39 : vector<17x32xf32>
    %41 = vector.broadcast %27 : vector<1x32xf32> to vector<17x32xf32>
    %42 = arith.mulf %40, %41 : vector<17x32xf32>
    %cst_22 = arith.constant dense<0.000000e+00> : vector<17xf32>
    %43 = vector.multi_reduction <add>, %42, %cst_22 [1] : vector<17x32xf32> to vector<17xf32>
    %44 = vector.shape_cast %43 : vector<17xf32> to vector<17x1xf32>
    %45 = vector.broadcast %28 : vector<1x1xf32> to vector<17x1xf32>
    %46 = arith.addf %44, %45 : vector<17x1xf32>
    %cst_23 = arith.constant 5.000000e-01 : f32
    %47 = vector.broadcast %cst_23 : f32 to vector<17x1xf32>
    %48 = arith.mulf %47, %46 : vector<17x1xf32>
    %49 = math.tanh %48 : vector<17x1xf32>
    %cst_24 = arith.constant 5.000000e-01 : f32
    %50 = vector.broadcast %cst_24 : f32 to vector<17x1xf32>
    %51 = arith.mulf %50, %49 : vector<17x1xf32>
    %cst_25 = arith.constant 5.000000e-01 : f32
    %52 = vector.broadcast %cst_25 : f32 to vector<17x1xf32>
    %53 = arith.addf %51, %52 : vector<17x1xf32>
    %c0_26 = arith.constant 0 : index
    %c0_27 = arith.constant 0 : index
    %54 = vector.load %arg6[%c0_26, %c0_27] : memref<2x17xf32, #tpu.memory_space<vmem>>, vector<2x17xf32>
    %c0_28 = arith.constant 0 : index
    %c0_29 = arith.constant 0 : index
    %55 = vector.load %arg5[%c0_28, %c0_29] : memref<17x8xf32, #tpu.memory_space<vmem>>, vector<17x8xf32>
    %56 = vector.broadcast %53 : vector<17x1xf32> to vector<17x8xf32>
    %57 = arith.mulf %56, %55 : vector<17x8xf32>
    %cst_30 = arith.constant dense<0.000000e+00> : vector<2x8xf32>
    %58 = tpu.matmul %54, %57, %cst_30 {dimension_numbers = #tpu.dot_dimension_numbers<[1], [0], [0], [1], [0, 0, 1, 1], [], []>} : vector<2x17xf32>, vector<17x8xf32>, vector<2x8xf32> -> vector<2x8xf32>
    %c0_31 = arith.constant 0 : index
    %c0_32 = arith.constant 0 : index
    %59 = vector.load %arg4[%c0_31, %c0_32] : memref<8x288xf32, #tpu.memory_space<vmem>>, vector<8x288xf32>
    %cst_33 = arith.constant dense<0.000000e+00> : vector<2x288xf32>
    %60 = tpu.matmul %58, %59, %cst_33 {dimension_numbers = #tpu.dot_dimension_numbers<[1], [0], [0], [1], [0, 0, 1, 1], [], []>} : vector<2x8xf32>, vector<8x288xf32>, vector<2x288xf32> -> vector<2x288xf32>
    %c0_34 = arith.constant 0 : index
    %c0_35 = arith.constant 0 : index
    %61 = vector.load %arg7[%c0_34, %c0_35] : memref<2x288xf32, #tpu.memory_space<vmem>>, vector<2x288xf32>
    tpu.vector_store %arg7[%c0_34, %c0_35], %60 {strides = array<i32>} : memref<2x288xf32, #tpu.memory_space<vmem>>, vector<2x288xf32>,
    return
  }
  func.func @transform_0(%arg0: i32) -> (i32, i32) {
    %c0_i32 = arith.constant 0 : i32
    %c0_i32_0 = arith.constant 0 : i32
    %c0_i32_1 = arith.constant 0 : i32
    return %c0_i32, %c0_i32_0 : i32, i32
  }
  func.func @transform_1(%arg0: i32) -> (i32, i32) {
    %c0_i32 = arith.constant 0 : i32
    %c0_i32_0 = arith.constant 0 : i32
    %c0_i32_1 = arith.constant 0 : i32
    return %c0_i32, %c0_i32_0 : i32, i32
  }
  func.func @transform_2(%arg0: i32) -> (i32, i32) {
    %c0_i32 = arith.constant 0 : i32
    %c0_i32_0 = arith.constant 0 : i32
    %c0_i32_1 = arith.constant 0 : i32
    return %c0_i32, %c0_i32_0 : i32, i32
  }
  func.func @transform_3(%arg0: i32) -> (i32, i32) {
    %c0_i32 = arith.constant 0 : i32
    %c0_i32_0 = arith.constant 0 : i32
    return %c0_i32, %arg0 : i32, i32
  }
  func.func @transform_4(%arg0: i32) -> (i32, i32) {
    %c0_i32 = arith.constant 0 : i32
    %c0_i32_0 = arith.constant 0 : i32
    %c0_i32_1 = arith.constant 0 : i32
    return %c0_i32, %c0_i32_0 : i32, i32
  }
  func.func @transform_5(%arg0: i32) -> (i32, i32) {
    %c0_i32 = arith.constant 0 : i32
    %c0_i32_0 = arith.constant 0 : i32
    %c0_i32_1 = arith.constant 0 : i32
    return %c0_i32, %c0_i32_0 : i32, i32
  }
  func.func @transform_6(%arg0: i32) -> (i32, i32) {
    %c0_i32 = arith.constant 0 : i32
    %c0_i32_0 = arith.constant 0 : i32
    return %c0_i32, %arg0 : i32, i32
  }
}

</mosaic_0001>

<llo_original>
// kernel: noise_detector.1
$region0: #{noise_detector.1}
  #allocation0 [shape = 'u32[]', space=smem, size = 0x4, offset = 0x4, fixed_abs, tag = 'smem constant byte address 0x4 - core index']
  #allocation1 [shape = 'u32[72,128]{1,0:T(1,128)}', space=vmem, size = 0x9000, scoped, tag = 'internal scratch']
  %s0 = inlined_call_operand.vmem [shape: f32[18,32], index: 0, kind: input, shape index: {}]
  %s1 = inlined_call_operand.vmem [shape: f32[64,32], index: 1, kind: input, shape index: {}]
  %s2 = inlined_call_operand.vmem [shape: f32[4,32], index: 2, kind: input, shape index: {}]
  %s3 = inlined_call_operand.vmem [shape: f32[8,288], index: 3, kind: input, shape index: {}]
  %s4 = inlined_call_operand.vmem [shape: f32[17,8], index: 4, kind: input, shape index: {}]
  %s5 = inlined_call_operand.vmem [shape: f32[2,17], index: 5, kind: input, shape index: {}]
  %s6 = inlined_call_operand.hbm [shape: f32[2,288], index: 6, kind: output, shape index: {}]
  %s7 = sld [smem:[#allocation0]]
  $region34: #{noise_detector.1} parent=0
    _
  %s9 = ssub.s32 1, %s7
  %s10 = scalar_select 0, %s9, %s7
  $region1: #{noise_detector.1} parent=0
    #allocation2 [shape = 'u8[3072]{0}', space=vmem, size = 0xc00, scoped, tag = 'output window, operand 0, single buffered']
    #allocation3 [shape = 's32[1]{0}', space=sflag, size = 0x4, scoped, tag = 'scoped memory for noise_detector.1']
    %11 = vsyncpa [#allocation3], 0
    // Predicated region
    $region2: #{noise_detector.1} parent=1 // pred_check
      _
    $region3: #{noise_detector.1} parent=1 // pred_check_branch
      %13 = sbr.rel (0) target = $region5
    $region4: #{noise_detector.1} parent=1 // pred_region
      _
    $region5: #{noise_detector.1} parent=1 // pred_fallthru
      _
    // Predicated region
    $region6: #{noise_detector.1} parent=1 // pred_check
      _
    $region7: #{noise_detector.1} parent=1 // pred_check_branch
      %15 = sbr.rel (0) target = $region9
    $region8: #{noise_detector.1} parent=1 // pred_region
      _
    $region9: #{noise_detector.1} parent=1 // pred_fallthru
      _
    // Predicated region
    $region10: #{noise_detector.1} parent=1 // pred_check
      _
    $region11: #{noise_detector.1} parent=1 // pred_check_branch
      %17 = sbr.rel (0) target = $region13
    $region12: #{noise_detector.1} parent=1 // pred_region
      _
    $region13: #{noise_detector.1} parent=1 // pred_fallthru
      _
    // Predicated region
    $region14: #{noise_detector.1} parent=1 // pred_check
      _
    $region15: #{noise_detector.1} parent=1 // pred_check_branch
      %19 = sbr.rel (0) target = $region17
    $region16: #{noise_detector.1} parent=1 // pred_region
      _
    $region17: #{noise_detector.1} parent=1 // pred_fallthru
      _
    // Predicated region
    $region18: #{noise_detector.1} parent=1 // pred_check
      _
    $region19: #{noise_detector.1} parent=1 // pred_check_branch
      %21 = sbr.rel (0) target = $region21
    $region20: #{noise_detector.1} parent=1 // pred_region
      _
    $region21: #{noise_detector.1} parent=1 // pred_fallthru
      _
    // Predicated region
    $region22: #{noise_detector.1} parent=1 // pred_check
      _
    $region23: #{noise_detector.1} parent=1 // pred_check_branch
      %23 = sbr.rel (0) target = $region25
    $region24: #{noise_detector.1} parent=1 // pred_region
      _
    $region25: #{noise_detector.1} parent=1 // pred_fallthru
      _
    %v24 = vld [vmem:[%s0] sm:$0xff]
    %v25 = vld [vmem:[%s0 + $0x8] sm:$0xff]
    %v26 = vld [vmem:[%s0 + $0x10] sm:$0x1]
    %v27 = vld [vmem:[%s0 + $0x1] sm:$0xff]
    %v28 = vld [vmem:[%s0 + $0x9] sm:$0xff]
    %v29 = vld [vmem:[%s0 + $0x11] sm:$0x1]
    %v30 = vld [vmem:[%s1] sm:$0xff]
    %v31 = vld [vmem:[%s1 + $0x8] sm:$0xff]
    %v32 = vld [vmem:[%s1 + $0x10] sm:$0xff]
    %v33 = vld [vmem:[%s1 + $0x18] sm:$0xff]
    %v34 = vld [vmem:[%s1 + $0x20] sm:$0xff]
    %v35 = vld [vmem:[%s1 + $0x28] sm:$0xff]
    %v36 = vld [vmem:[%s1 + $0x30] sm:$0xff]
    %v37 = vld [vmem:[%s1 + $0x38] sm:$0xff]
    %vm38 = vcmask 261120
    %v40 = vsel %vm38, %v27, 0
    %v43 = vsel %vm38, %v28, 0
    %v46 = vsel %vm38, %v29, 0
    %48 = vmatpush.msra.mxu0 0.0
    %49 = vmatpush.msra.mxu0 0.0
    %50 = vmatpush.msra.mxu0 0.0
    %51 = vmatpush.msra.mxu0 0.0
    %52 = vmatpush.msra.mxu0 0.0
    %53 = vmatpush.msra.mxu0 0.0
    %54 = vmatpush.msra.mxu0 0.0
    %55 = vmatpush.msra.mxu0 0.0
    %56 = vmatpush.msra.mxu0 0.0
    %57 = vmatpush.msra.mxu0 0.0
    %58 = vmatpush.msra.mxu0 0.0
    %59 = vmatpush.msra.mxu0 0.0
    %60 = vmatpush.msra.mxu0 %v37
    %61 = vmatpush.msra.mxu0 %v36
    %62 = vmatpush.msra.mxu0 %v35
    %63 = vmatpush.msra.mxu0 %v34
    %64 = vmatmul.f32.gmra.mxu0 %v40
    %v65 = vpop.f32.mrf.mxu0
    %v66 = vadd.f32 0.0, %v65
    %67 = vmatmul.f32.gmra.mxu0 %v43
    %v68 = vpop.f32.mrf.mxu0
    %v69 = vadd.f32 0.0, %v68
    %70 = vmatmul.f32.gmra.mxu0 %v46
    %v71 = vpop.f32.mrf.mxu0
    %v72 = vadd.f32 0.0, %v71
    %73 = vdwg.mxu0
    %v75 = vsel %vm38, %v24, 0
    %v78 = vsel %vm38, %v25, 0
    %v81 = vsel %vm38, %v26, 0
    %83 = vmatpush.msra.mxu0 0.0
    %84 = vmatpush.msra.mxu0 0.0
    %85 = vmatpush.msra.mxu0 0.0
    %86 = vmatpush.msra.mxu0 0.0
    %87 = vmatpush.msra.mxu0 0.0
    %88 = vmatpush.msra.mxu0 0.0
    %89 = vmatpush.msra.mxu0 0.0
    %90 = vmatpush.msra.mxu0 0.0
    %91 = vmatpush.msra.mxu0 0.0
    %92 = vmatpush.msra.mxu0 0.0
    %93 = vmatpush.msra.mxu0 0.0
    %94 = vmatpush.msra.mxu0 0.0
    %95 = vmatpush.msra.mxu0 %v33
    %96 = vmatpush.msra.mxu0 %v32
    %97 = vmatpush.msra.mxu0 %v31
    %98 = vmatpush.msra.mxu0 %v30
    %99 = vmatmul.f32.gmra.mxu0 %v75
    %v100 = vpop.f32.mrf.mxu0
    %v101 = vadd.f32 %v66, %v100
    %102 = vmatmul.f32.gmra.mxu0 %v78
    %v103 = vpop.f32.mrf.mxu0
    %v104 = vadd.f32 %v69, %v103
    %105 = vmatmul.f32.gmra.mxu0 %v81
    %v106 = vpop.f32.mrf.mxu0
    %v107 = vadd.f32 %v72, %v106
    %108 = vdwg.mxu0
    %v109 = vld [vmem:[%s4] sm:$0xff]
    %v110 = vld [vmem:[%s4 + $0x8] sm:$0xff]
    %v111 = vld [vmem:[%s4 + $0x10] sm:$0x1]
    %vm112 = vcmask 64512
    %v113 = vsel %vm112, %v109, 0.0
    %114 = vadd.xlane.f32.xlu0 %v113
    %v115 = vpop.xlane.xlu0 %114
    %v116 = vsel %vm112, %v110, 0.0
    %117 = vadd.xlane.f32.xlu0 %v116
    %v118 = vpop.xlane.xlu0 %117
    %vm119 = vcmask 57344
    %v120 = vsel %vm119, %v111, 0.0
    %121 = vadd.xlane.f32.xlu0 %v120
    %v122 = vpop.xlane.xlu0 %121
    %v123 = vmul.f32 %v101, %v115
    %v124 = vmul.f32 %v104, %v118
    %v125 = vmul.f32 %v107, %v122
    %v126 = vsel %vm38, %v123, 0.0
    %v127 = vsel %vm38, %v124, 0.0
    %v128 = vadd.f32 %v126, %v127
    %vm129 = vcmask 253952
    %v130 = vsel %vm129, %v125, 0.0
    %v131 = vadd.f32 %v128, %v130
    %v132 = vrot.slane %v131, 4
    %v133 = vadd.f32 %v131, %v132
    %v134 = vrot.slane %v133, 2
    %v135 = vadd.f32 %v133, %v134
    %v136 = vrot.slane %v135, 1
    %v137 = vadd.f32 %v135, %v136
    %v138 = vmul.f32 %v137, 0.0625
    %v139 = vmul.f32 %v123, %v101
    %v140 = vmul.f32 %v124, %v104
    %v141 = vmul.f32 %v125, %v107
    %v142 = vsel %vm38, %v139, 0.0
    %v143 = vsel %vm38, %v140, 0.0
    %v144 = vadd.f32 %v142, %v143
    %v145 = vsel %vm129, %v141, 0.0
    %v146 = vadd.f32 %v144, %v145
    %v147 = vrot.slane %v146, 4
    %v148 = vadd.f32 %v146, %v147
    %v149 = vrot.slane %v148, 2
    %v150 = vadd.f32 %v148, %v149
    %v151 = vrot.slane %v150, 1
    %v152 = vadd.f32 %v150, %v151
    %v153 = vmul.f32 %v152, 0.0625
    %v154 = vmul.f32 %v138, %v138
    %v155 = vsub.f32 %v153, %v154
    %v156 = vmax.f32 %v155, 0.0
    %v157 = vld [vmem:[%s2] sm:$0x1]
    %v158 = vld [vmem:[%s2 + $0x1] sm:$0x1]
    %v159 = vld [vmem:[%s2 + $0x2] sm:$0x1]
    %v160 = vld [vmem:[%s2 + $0x3] sm:$0x1]
    %v161 = vadd.f32 %v156, 1e-05
    %v162 = vrsqrt.pop %v161
    %v163 = vmul.f32 %v162, %v161
    %v164 = vmul.f32 %v163, %v162
    %v165 = vmul.f32 0.5, %v164
    %v166 = vsub.f32 1.5, %v165
    %v167 = vmul.f32 %v162, %v166
    %vm168 = vweird.f32 %v161
    %vm169 = vweird.f32 %v162
    %vm170 = vmor %vm168, %vm169
    %v171 = vsel %vm170, %v162, %v167
    %v172 = vmul.f32 %v157, %v171
    %v173 = vmul.f32 %v138, %v172
    %v174 = vsub.f32 %v158, %v173
    %v175 = vperm.slane %v172, 0
    %v176 = vmul.f32 %v101, %v175
    %v177 = vmul.f32 %v104, %v175
    %v178 = vmul.f32 %v107, %v175
    %v179 = vperm.slane %v174, 0
    %v180 = vadd.f32 %v176, %v179
    %v181 = vadd.f32 %v177, %v179
    %v182 = vadd.f32 %v178, %v179
    %v183 = vmax.f32 %v180, 0.0
    %v184 = vmax.f32 %v181, 0.0
    %v185 = vmax.f32 %v182, 0.0
    %v186 = vperm.slane %v159, 0
    %v187 = vmul.f32 %v183, %v186
    %v188 = vmul.f32 %v184, %v186
    %v189 = vmul.f32 %v185, %v186
    %v190 = vsel %vm38, %v187, 0.0
    %191 = vadd.xlane.f32.xlu0 %v190
    %v192 = vpop.xlane.xlu0 %191
    %v193 = vsel %vm38, %v188, 0.0
    %194 = vadd.xlane.f32.xlu0 %v193
    %v195 = vpop.xlane.xlu0 %194
    %v196 = vsel %vm129, %v189, 0.0
    %197 = vadd.xlane.f32.xlu0 %v196
    %v198 = vpop.xlane.xlu0 %197
    %v199 = vperm.slane %v160, 0
    %v200 = vadd.f32 %v192, %v199
    %v201 = vadd.f32 %v195, %v199
    %v202 = vadd.f32 %v198, %v199
    %v203 = vmul.f32 %v200, 0.5
    %v204 = vmul.f32 %v201, 0.5
    %v205 = vmul.f32 %v202, 0.5
    %v206 = vtanh.pop %v203
    %v207 = vtanh.pop %v204
    %v208 = vtanh.pop %v205
    %v209 = vmul.f32 %v206, 0.5
    %v210 = vmul.f32 %v207, 0.5
    %v211 = vmul.f32 %v208, 0.5
    %v212 = vadd.f32 %v209, 0.5
    %v213 = vadd.f32 %v210, 0.5
    %v214 = vadd.f32 %v211, 0.5
    %v215 = vld [vmem:[%s5] sm:$0x3]
    %217 = vset.pattern.permute.xlu0 0
    %218 = vperm.xlu0 %217, %v212
    %v219 = vpop.permute.xlu0 %218
    %222 = vset.pattern.permute.xlu0 0
    %223 = vperm.xlu0 %222, %v213
    %v224 = vpop.permute.xlu0 %223
    %227 = vset.pattern.permute.xlu0 0
    %228 = vperm.xlu0 %227, %v214
    %v229 = vpop.permute.xlu0 %228
    %v231 = vmul.f32 %v219, %v109
    %v232 = vmul.f32 %v224, %v110
    %v233 = vmul.f32 %v229, %v111
    %vm234 = vcmask 138240
    %v236 = vsel %vm234, %v215, 0
    %vm238 = vcmask 1040384
    %v240 = vsel %vm238, %v233, 0
    %242 = vmatpush.msra.mxu0 0.0
    %243 = vmatpush.msra.mxu0 0.0
    %244 = vmatpush.msra.mxu0 0.0
    %245 = vmatpush.msra.mxu0 0.0
    %246 = vmatpush.msra.mxu0 0.0
    %247 = vmatpush.msra.mxu0 0.0
    %248 = vmatpush.msra.mxu0 0.0
    %249 = vmatpush.msra.mxu0 0.0
    %250 = vmatpush.msra.mxu0 0.0
    %251 = vmatpush.msra.mxu0 0.0
    %252 = vmatpush.msra.mxu0 0.0
    %253 = vmatpush.msra.mxu0 0.0
    %254 = vmatpush.msra.mxu0 0.0
    %255 = vmatpush.msra.mxu0 %v240
    %256 = vmatpush.msra.mxu0 %v232
    %257 = vmatpush.msra.mxu0 %v231
    %258 = vmatmul.f32.gmra.mxu0 %v236
    %v259 = vpop.f32.mrf.mxu0
    %v260 = vadd.f32 0.0, %v259
    %261 = vdwg.mxu0
    %v262 = vld [vmem:[%s3] sm:$0xff]
    %v263 = vld [vmem:[%s3 + $0x8] sm:$0xff]
    %v264 = vld [vmem:[%s3 + $0x10] sm:$0xff]
    %v266 = vsel %vm112, %v260, 0
    %268 = vmatpush.msra.mxu0 0.0
    %269 = vmatpush.msra.mxu0 0.0
    %270 = vmatpush.msra.mxu0 0.0
    %271 = vmatpush.msra.mxu0 0.0
    %272 = vmatpush.msra.mxu0 0.0
    %273 = vmatpush.msra.mxu0 0.0
    %274 = vmatpush.msra.mxu0 0.0
    %275 = vmatpush.msra.mxu0 0.0
    %276 = vmatpush.msra.mxu0 0.0
    %277 = vmatpush.msra.mxu0 0.0
    %278 = vmatpush.msra.mxu0 0.0
    %279 = vmatpush.msra.mxu0 0.0
    %280 = vmatpush.msra.mxu0 0.0
    %281 = vmatpush.msra.mxu0 0.0
    %282 = vmatpush.msra.mxu0 0.0
    %283 = vmatpush.msra.mxu0 %v262
    %284 = vmatmul.f32.gmra.mxu0 %v266
    %v285 = vpop.f32.mrf.mxu0
    %v286 = vadd.f32 0.0, %v285
    %287 = vdwg.mxu0
    %288 = vmatpush.msra.mxu0 0.0
    %289 = vmatpush.msra.mxu0 0.0
    %290 = vmatpush.msra.mxu0 0.0
    %291 = vmatpush.msra.mxu0 0.0
    %292 = vmatpush.msra.mxu0 0.0
    %293 = vmatpush.msra.mxu0 0.0
    %294 = vmatpush.msra.mxu0 0.0
    %295 = vmatpush.msra.mxu0 0.0
    %296 = vmatpush.msra.mxu0 0.0
    %297 = vmatpush.msra.mxu0 0.0
    %298 = vmatpush.msra.mxu0 0.0
    %299 = vmatpush.msra.mxu0 0.0
    %300 = vmatpush.msra.mxu0 0.0
    %301 = vmatpush.msra.mxu0 0.0
    %302 = vmatpush.msra.mxu0 0.0
    %303 = vmatpush.msra.mxu0 %v263
    %304 = vmatmul.f32.gmra.mxu0 %v266
    %v305 = vpop.f32.mrf.mxu0
    %v306 = vadd.f32 0.0, %v305
    %307 = vdwg.mxu0
    %308 = vmatpush.msra.mxu0 0.0
    %309 = vmatpush.msra.mxu0 0.0
    %310 = vmatpush.msra.mxu0 0.0
    %311 = vmatpush.msra.mxu0 0.0
    %312 = vmatpush.msra.mxu0 0.0
    %313 = vmatpush.msra.mxu0 0.0
    %314 = vmatpush.msra.mxu0 0.0
    %315 = vmatpush.msra.mxu0 0.0
    %316 = vmatpush.msra.mxu0 0.0
    %317 = vmatpush.msra.mxu0 0.0
    %318 = vmatpush.msra.mxu0 0.0
    %319 = vmatpush.msra.mxu0 0.0
    %320 = vmatpush.msra.mxu0 0.0
    %321 = vmatpush.msra.mxu0 0.0
    %322 = vmatpush.msra.mxu0 0.0
    %323 = vmatpush.msra.mxu0 %v264
    %324 = vmatmul.f32.gmra.mxu0 %v266
    %v325 = vpop.f32.mrf.mxu0
    %v326 = vadd.f32 0.0, %v325
    %327 = vdwg.mxu0
    %v331 = vrot.slane %v306, 6
    %v332 = vrot.slane %v326, 4
    %vm333 = vcmask 1041408
    %v334 = vsel %vm333, %v286, %v331
    %vm335 = vcmask 1043456
    %v336 = vsel %vm335, %v334, %v332
    %vm338 = vcmask 1043458
    %vm339 = vmor %vm338, %vm333
    %vm340 = vcmask 259076
    %vm341 = vmor %vm340, %vm339
    %342 = vst.msk [vmem:[#allocation2] sm:$0x3f] %vm341, %v336
    // Predicated region
    $region26: #{noise_detector.1} parent=1 // pred_check
      _
    $region27: #{noise_detector.1} parent=1 // pred_check_branch
      %344 = sbr.rel (0) target = $region29
    $region28: #{noise_detector.1} parent=1 // pred_region
      %346 = vsyncadd [#allocation3], 0
      %s348 = sshll.u32 [#allocation2], 4
      %s349 = int_to_ptr.vmem [resolvable:$true] %s348
      %s350 = sshll.u32 %s6, 4
      %s351 = int_to_ptr.hbm [resolvable:$true] %s350
      %353 = dma.vmem_to_hbm [thread:$0]  %s349, 96, %s351, [#allocation3]
    $region29: #{noise_detector.1} parent=1 // pred_fallthru
      _
    // Predicated region
    $region30: #{noise_detector.1} parent=1 // pred_check
      _
    $region31: #{noise_detector.1} parent=1 // pred_check_branch
      %355 = sbr.rel (0) target = $region33
    $region32: #{noise_detector.1} parent=1 // pred_region
      %357 = dma.done [#allocation3], 96
    $region33: #{noise_detector.1} parent=1 // pred_fallthru
      _
    %358 = vsyncpa [#allocation3], 1

</llo_original>
